<compile_context>
chip_gen: v7x
topology: tpu7x:2x2x1
jax: 0.10.0
libtpu: 0.0.40
codegen_flags: <defaults>
</compile_context>

<pallas_src>
import functools

import jax
import jax.numpy as jnp
from jax import lax
from jax.experimental import pallas as pl
from jax.experimental.pallas import tpu as pltpu


def _ceil_to(x, m):
    return (x + m - 1) // m * m


def _ffn_kernel(xp_ref, w1_ref, b1_ref, w2_ref, b2_ref, o_ref,
                *, pad_left2, seq_len, he_pad):
    """One (batch, seq-tile) grid step.

    xp_ref : (Sp, Cin_p)        padded input, whole sequence (resident per b)
    w1_ref : (K1*Cin_p, 2*H_p)  conv1 weight, taps folded into contraction,
                                SwiGLU halves fused side by side
    b1_ref : (1, 2*H_p)         f32
    w2_ref : (K2, H_p, Cout_p)
    b2_ref : (1, Cout_p)        f32
    o_ref  : (TS, Cout_p)       output tile
    """
    TS, Cout_p = o_ref.shape
    Cin_p = xp_ref.shape[-1]
    K1 = w1_ref.shape[0] // Cin_p
    K2, H_p, _ = w2_ref.shape
    HE = he_pad                       # sublane-aligned extended hidden rows
    WIN = HE + K1 - 1                 # input rows needed for this tile

    t = pl.program_id(1)
    row0 = pl.multiple_of(t * TS, 8)  # TS is a multiple of 8 -> aligned start

    # ---- conv1 as a single deep matmul (taps folded into contraction) ----
    win = xp_ref[pl.ds(row0, WIN), :]                           # (WIN, Cin_p)
    x_cat = jnp.concatenate([win[k:k + HE, :] for k in range(K1)], axis=-1)
    h12 = jnp.dot(x_cat, w1_ref[...],
                  preferred_element_type=jnp.float32)           # (HE, 2*H_p)
    h12 = h12 + b1_ref[...]

    # ---- SwiGLU: silu(x1) * x2 (halves are lane-aligned slices) ----
    x1 = h12[:, :H_p]
    x2 = h12[:, H_p:]
    hidden = (x1 * jax.nn.sigmoid(x1)) * x2                     # (HE, H_p) f32

    # ---- zero out-of-sequence rows (conv2's zero padding / tile overrun) ----
    q = lax.broadcasted_iota(jnp.int32, (HE, 1), 0) + (t * TS - pad_left2)
    valid = jnp.logical_and(q >= 0, q < seq_len)
    hidden = jnp.where(valid, hidden, 0.0).astype(w2_ref.dtype)

    # ---- conv2: K2 shifted matmuls on the resident hidden tile ----
    acc = jnp.dot(hidden[0:TS, :], w2_ref[0],
                  preferred_element_type=jnp.float32)
    for j in range(1, K2):
        acc = acc + jnp.dot(hidden[j:j + TS, :], w2_ref[j],
                            preferred_element_type=jnp.float32)
    o_ref[...] = (acc + b2_ref[...]).astype(o_ref.dtype)


def swiglu_conv_ffn(x, params, kernel_size=(3, 3), causal=False, seq_tile=256):
    """x: (B, S, in_features) -> (B, S, out_features)."""
    B, S, Cin = x.shape
    w1, b1, w2, b2 = params["w1"], params["b1"], params["w2"], params["b2"]
    K1, K2 = kernel_size
    expand = w1.shape[0]
    H = expand // 2
    Cout = w2.shape[0]
    dt = x.dtype

    if causal:
        lp1, lp2 = K1 - 1, K2 - 1
    else:
        lp1, lp2 = (K1 - 1) // 2, (K2 - 1) // 2

    # lane-dense channel padding (multiples of 128)
    Cin_p = _ceil_to(Cin, 128)
    H_p = _ceil_to(H, 128)
    Cout_p = _ceil_to(Cout, 128)

    # sequence tiling (tile is a multiple of 8 sublanes)
    TS = min(seq_tile, _ceil_to(S, 8))
    S_pad = _ceil_to(S, TS)
    T = S_pad // TS

    # extended-hidden rows per tile, rounded to sublanes; input window per tile
    HE_pad = _ceil_to(TS + K2 - 1, 8)
    WIN = HE_pad + K1 - 1
    Sp = S_pad - TS + WIN             # rows the last tile's window reaches
    right_pad = Sp - (lp1 + lp2) - S  # >= rp1 + rp2 + (S_pad - S), never < 0

    # pad input once: sequence halo for BOTH convs + tile rounding + channels.
    xp = jnp.pad(x, ((0, 0), (lp1 + lp2, right_pad), (0, Cin_p - Cin)))

    # conv1 weights: torch (2H, Cin, K1) -> (K1*Cin_p, 2*H_p); SwiGLU halves
    # fused side-by-side so a single matmul yields both.
    w1t = jnp.transpose(w1, (2, 1, 0)).astype(dt)               # (K1, Cin, 2H)
    w1a = jnp.pad(w1t[:, :, :H], ((0, 0), (0, Cin_p - Cin), (0, H_p - H)))
    w1b = jnp.pad(w1t[:, :, H:], ((0, 0), (0, Cin_p - Cin), (0, H_p - H)))
    w1f = jnp.concatenate([w1a, w1b], axis=-1).reshape(K1 * Cin_p, 2 * H_p)

    b1f = jnp.concatenate([jnp.pad(b1[:H], (0, H_p - H)),
                           jnp.pad(b1[H:], (0, H_p - H))]
                          ).reshape(1, 2 * H_p).astype(jnp.float32)

    # conv2 weights: torch (Cout, H, K2) -> (K2, H_p, Cout_p)
    w2t = jnp.transpose(w2, (2, 1, 0)).astype(dt)               # (K2, H, Cout)
    w2f = jnp.pad(w2t, ((0, 0), (0, H_p - H), (0, Cout_p - Cout)))
    b2f = jnp.pad(b2, (0, Cout_p - Cout)).reshape(1, Cout_p).astype(jnp.float32)

    grid_spec = pltpu.PrefetchScalarGridSpec(
        num_scalar_prefetch=0,
        grid=(B, T),
        in_specs=[
            # whole padded sequence per batch element; index is constant along
            # the seq-tile axis so it is only fetched once per batch element.
            pl.BlockSpec((None, Sp, Cin_p), lambda b, t: (b, 0, 0)),
            pl.BlockSpec((K1 * Cin_p, 2 * H_p), lambda b, t: (0, 0)),
            pl.BlockSpec((1, 2 * H_p), lambda b, t: (0, 0)),
            pl.BlockSpec((K2, H_p, Cout_p), lambda b, t: (0, 0, 0)),
            pl.BlockSpec((1, Cout_p), lambda b, t: (0, 0)),
        ],
        out_specs=pl.BlockSpec((None, TS, Cout_p), lambda b, t: (b, t, 0)),
    )

    out = pl.pallas_call(
        functools.partial(_ffn_kernel, pad_left2=lp2, seq_len=S,
                          he_pad=HE_pad),
        out_shape=jax.ShapeDtypeStruct((B, S_pad, Cout_p), dt),
        grid_spec=grid_spec,
        compiler_params=pltpu.CompilerParams(
            dimension_semantics=("parallel", "parallel"),
            vmem_limit_bytes=48 * 1024 * 1024),
    )(xp, w1f, b1f, w2f, b2f)

    return out[:, :S, :Cout]


def reference(x, params, kernel_size=(3, 3), causal=False):
    """Pure-JAX reference matching the PyTorch forward (mask=None, drop=0)."""
    K1, K2 = kernel_size
    xt = jnp.transpose(x, (0, 2, 1))          # NCL, like PyTorch transpose(1,2)

    def pad(v, K):
        if K == 1:
            return v
        if causal:
            return jnp.pad(v, ((0, 0), (0, 0), (K - 1, 0)))
        return jnp.pad(v, ((0, 0), (0, 0), ((K - 1) // 2, K // 2)))

    def conv1d(v, w, b):
        y = lax.conv_general_dilated(
            v, w, window_strides=(1,), padding="VALID",
            dimension_numbers=("NCH", "OIH", "NCH"))
        return y + b[None, :, None]

    x12 = conv1d(pad(xt, K1), params["w1"], params["b1"])
    H = params["w1"].shape[0] // 2
    x1, x2 = x12[:, :H], x12[:, H:]
    hidden = jax.nn.silu(x1) * x2
    out = conv1d(pad(hidden, K2), params["w2"], params["b2"])
    return jnp.transpose(out, (0, 2, 1))


if __name__ == "__main__":
    # small shapes: batch=2, seq=16, in_features=4, hidden_features=32, out=4
    B, S = 2, 16
    in_features, hidden_features = 4, 32
    out_features = in_features
    K1 = K2 = 3
    expand = 2 * hidden_features            # swiglu

    key = jax.random.PRNGKey(0)
    kx, kw1, kb1, kw2, kb2 = jax.random.split(key, 5)

    x = jax.random.normal(kx, (B, S, in_features), dtype=jnp.float32)
    params = {
        # PyTorch Conv1d weight layout: (out_channels, in_channels, kernel)
        "w1": 0.2 * jax.random.normal(kw1, (expand, in_features, K1), jnp.float32),
        "b1": 0.1 * jax.random.normal(kb1, (expand,), jnp.float32),
        "w2": 0.2 * jax.random.normal(kw2, (out_features, hidden_features, K2), jnp.float32),
        "b2": 0.1 * jax.random.normal(kb2, (out_features,), jnp.float32),
    }

    # f32 path, both padding modes
    for causal in (False, True):
        out = jax.block_until_ready(
            swiglu_conv_ffn(x, params, kernel_size=(K1, K2), causal=causal))
        ref = reference(x, params, kernel_size=(K1, K2), causal=causal)
        assert out.shape == (B, S, out_features)
        err = jnp.max(jnp.abs(out - ref))
        assert jnp.allclose(out, ref, atol=2e-4, rtol=2e-4), (
            f"causal={causal} max abs err = {err}")

    # bf16 activation/weight path (f32 accumulation) — looser tolerance.
    out_bf16 = jax.block_until_ready(
        swiglu_conv_ffn(x.astype(jnp.bfloat16), params, kernel_size=(K1, K2)))
    ref = reference(x, params, kernel_size=(K1, K2), causal=False)
    bf16_err = jnp.max(jnp.abs(out_bf16.astype(jnp.float32) - ref))
    assert bf16_err < 0.1, f"bf16 max abs err = {bf16_err}"

    print("KERNEL_OK")
</pallas_src>

<mosaic_0001>
module attributes {stable_mosaic.version = 11 : i64} {
  func.func @_ffn_kernel(%arg0: i32, %arg1: i32, %arg2: memref<1x26x128xf32, #tpu.memory_space<vmem>>, %arg3: memref<384x256xf32, #tpu.memory_space<vmem>>, %arg4: memref<1x256xf32, #tpu.memory_space<vmem>>, %arg5: memref<3x128x128xf32, #tpu.memory_space<vmem>>, %arg6: memref<1x128xf32, #tpu.memory_space<vmem>>, %arg7: memref<1x16x128xf32, #tpu.memory_space<vmem>>) attributes {dimension_semantics = [#tpu.dimension_semantics<parallel>, #tpu.dimension_semantics<parallel>], iteration_bounds = array<i64: 2, 1>, scalar_prefetch = 0 : i64, scratch_operands = 0 : i64, tpu.core_type = #tpu.core_type<tc>, window_params = [{transform_indices = @transform_0, window_bounds = array<i64: 1, 26, 128>}, {pipeline_mode = #tpu.pipeline_mode<synchronous>, transform_indices = @transform_1, window_bounds = array<i64: 384, 256>}, {pipeline_mode = #tpu.pipeline_mode<synchronous>, transform_indices = @transform_2, window_bounds = array<i64: 1, 256>}, {pipeline_mode = #tpu.pipeline_mode<synchronous>, transform_indices = @transform_3, window_bounds = array<i64: 3, 128, 128>}, {pipeline_mode = #tpu.pipeline_mode<synchronous>, transform_indices = @transform_4, window_bounds = array<i64: 1, 128>}, {transform_indices = @transform_5, window_bounds = array<i64: 1, 16, 128>}]} {
    %c16_i32 = arith.constant 16 : i32
    %0 = arith.muli %arg1, %c16_i32 : i32
    %1 = tpu.assume_multiple %0, 8 : i32
    %c0 = arith.constant 0 : index
    %2 = arith.index_cast %1 : i32 to index
    %c0_0 = arith.constant 0 : index
    %3 = vector.load %arg2[%c0, %2, %c0_0] : memref<1x26x128xf32, #tpu.memory_space<vmem>>, vector<1x26x128xf32>
    %4 = vector.shape_cast %3 : vector<1x26x128xf32> to vector<26x128xf32>
    %5 = vector.extract_strided_slice %4 {offsets = [0, 0], sizes = [24, 128], strides = [1, 1]} : vector<26x128xf32> to vector<24x128xf32>
    %6 = vector.extract_strided_slice %4 {offsets = [1, 0], sizes = [24, 128], strides = [1, 1]} : vector<26x128xf32> to vector<24x128xf32>
    %7 = vector.extract_strided_slice %4 {offsets = [2, 0], sizes = [24, 128], strides = [1, 1]} : vector<26x128xf32> to vector<24x128xf32>
    %8 = tpu.concatenate %5, %6, %7 in 1 : vector<24x128xf32>, vector<24x128xf32>, vector<24x128xf32> -> vector<24x384xf32>
    %c0_1 = arith.constant 0 : index
    %c0_2 = arith.constant 0 : index
    %9 = vector.load %arg3[%c0_1, %c0_2] : memref<384x256xf32, #tpu.memory_space<vmem>>, vector<384x256xf32>
    %cst = arith.constant dense<0.000000e+00> : vector<24x256xf32>
    %10 = tpu.matmul %8, %9, %cst {dimension_numbers = #tpu.dot_dimension_numbers<[1], [0], [0], [1], [0, 0, 1, 1], [], []>} : vector<24x384xf32>, vector<384x256xf32>, vector<24x256xf32> -> vector<24x256xf32>
    %c0_3 = arith.constant 0 : index
    %c0_4 = arith.constant 0 : index
    %11 = vector.load %arg4[%c0_3, %c0_4] : memref<1x256xf32, #tpu.memory_space<vmem>>, vector<1x256xf32>
    %12 = vector.broadcast %11 : vector<1x256xf32> to vector<24x256xf32>
    %13 = arith.addf %10, %12 : vector<24x256xf32>
    %14 = vector.extract_strided_slice %13 {offsets = [0, 0], sizes = [24, 128], strides = [1, 1]} : vector<24x256xf32> to vector<24x128xf32>
    %15 = vector.extract_strided_slice %13 {offsets = [0, 128], sizes = [24, 128], strides = [1, 1]} : vector<24x256xf32> to vector<24x128xf32>
    %16 = arith.negf %14 : vector<24x128xf32>
    %17 = math.exp %16 : vector<24x128xf32>
    %cst_5 = arith.constant 1.000000e+00 : f32
    %18 = vector.broadcast %cst_5 : f32 to vector<24x128xf32>
    %19 = arith.addf %18, %17 : vector<24x128xf32>
    %20 = arith.divf %18, %19 : vector<24x128xf32>
    %21 = arith.mulf %14, %20 : vector<24x128xf32>
    %22 = arith.mulf %21, %15 : vector<24x128xf32>
    %23 = tpu.iota {dimensions = array<i32: 0>} : vector<24x1xi32>
    %c16_i32_6 = arith.constant 16 : i32
    %24 = arith.muli %arg1, %c16_i32_6 : i32
    %c1_i32 = arith.constant 1 : i32
    %25 = arith.subi %24, %c1_i32 : i32
    %26 = vector.broadcast %25 : i32 to vector<24x1xi32>
    %27 = arith.addi %23, %26 : vector<24x1xi32>
    %c0_i32 = arith.constant 0 : i32
    %28 = vector.broadcast %c0_i32 : i32 to vector<24x1xi32>
    %29 = arith.cmpi sge, %27, %28 : vector<24x1xi32>
    %c16_i32_7 = arith.constant 16 : i32
    %30 = vector.broadcast %c16_i32_7 : i32 to vector<24x1xi32>
    %31 = arith.cmpi slt, %27, %30 : vector<24x1xi32>
    %32 = arith.andi %29, %31 : vector<24x1xi1>
    %cst_8 = arith.constant 0.000000e+00 : f32
    %33 = vector.shape_cast %32 : vector<24x1xi1> to vector<24x1xi1>
    %34 = vector.broadcast %33 : vector<24x1xi1> to vector<24x128xi1>
    %35 = vector.broadcast %cst_8 : f32 to vector<24x128xf32>
    %36 = arith.select %34, %22, %35 : vector<24x128xi1>, vector<24x128xf32>
    %37 = vector.extract_strided_slice %36 {offsets = [0, 0], sizes = [16, 128], strides = [1, 1]} : vector<24x128xf32> to vector<16x128xf32>
    %c0_9 = arith.constant 0 : index
    %c0_10 = arith.constant 0 : index
    %c0_11 = arith.constant 0 : index
    %38 = vector.load %arg5[%c0_9, %c0_10, %c0_11] : memref<3x128x128xf32, #tpu.memory_space<vmem>>, vector<1x128x128xf32>
    %39 = vector.shape_cast %38 : vector<1x128x128xf32> to vector<128x128xf32>
    %cst_12 = arith.constant dense<0.000000e+00> : vector<16x128xf32>
    %40 = tpu.matmul %37, %39, %cst_12 {dimension_numbers = #tpu.dot_dimension_numbers<[1], [0], [0], [1], [0, 0, 1, 1], [], []>} : vector<16x128xf32>, vector<128x128xf32>, vector<16x128xf32> -> vector<16x128xf32>
    %41 = vector.extract_strided_slice %36 {offsets = [1, 0], sizes = [16, 128], strides = [1, 1]} : vector<24x128xf32> to vector<16x128xf32>
    %c1 = arith.constant 1 : index
    %c0_13 = arith.constant 0 : index
    %c0_14 = arith.constant 0 : index
    %42 = vector.load %arg5[%c1, %c0_13, %c0_14] : memref<3x128x128xf32, #tpu.memory_space<vmem>>, vector<1x128x128xf32>
    %43 = vector.shape_cast %42 : vector<1x128x128xf32> to vector<128x128xf32>
    %cst_15 = arith.constant dense<0.000000e+00> : vector<16x128xf32>
    %44 = tpu.matmul %41, %43, %cst_15 {dimension_numbers = #tpu.dot_dimension_numbers<[1], [0], [0], [1], [0, 0, 1, 1], [], []>} : vector<16x128xf32>, vector<128x128xf32>, vector<16x128xf32> -> vector<16x128xf32>
    %45 = arith.addf %40, %44 : vector<16x128xf32>
    %46 = vector.extract_strided_slice %36 {offsets = [2, 0], sizes = [16, 128], strides = [1, 1]} : vector<24x128xf32> to vector<16x128xf32>
    %c2 = arith.constant 2 : index
    %c0_16 = arith.constant 0 : index
    %c0_17 = arith.constant 0 : index
    %47 = vector.load %arg5[%c2, %c0_16, %c0_17] : memref<3x128x128xf32, #tpu.memory_space<vmem>>, vector<1x128x128xf32>
    %48 = vector.shape_cast %47 : vector<1x128x128xf32> to vector<128x128xf32>
    %cst_18 = arith.constant dense<0.000000e+00> : vector<16x128xf32>
    %49 = tpu.matmul %46, %48, %cst_18 {dimension_numbers = #tpu.dot_dimension_numbers<[1], [0], [0], [1], [0, 0, 1, 1], [], []>} : vector<16x128xf32>, vector<128x128xf32>, vector<16x128xf32> -> vector<16x128xf32>
    %50 = arith.addf %45, %49 : vector<16x128xf32>
    %c0_19 = arith.constant 0 : index
    %c0_20 = arith.constant 0 : index
    %51 = vector.load %arg6[%c0_19, %c0_20] : memref<1x128xf32, #tpu.memory_space<vmem>>, vector<1x128xf32>
    %52 = vector.broadcast %51 : vector<1x128xf32> to vector<16x128xf32>
    %53 = arith.addf %50, %52 : vector<16x128xf32>
    %c0_21 = arith.constant 0 : index
    %c0_22 = arith.constant 0 : index
    %c0_23 = arith.constant 0 : index
    %54 = vector.load %arg7[%c0_21, %c0_22, %c0_23] : memref<1x16x128xf32, #tpu.memory_space<vmem>>, vector<1x16x128xf32>
    %55 = vector.shape_cast %54 : vector<1x16x128xf32> to vector<16x128xf32>
    %56 = vector.shape_cast %53 : vector<16x128xf32> to vector<1x16x128xf32>
    tpu.vector_store %arg7[%c0_21, %c0_22, %c0_23], %56 {strides = array<i32>} : memref<1x16x128xf32, #tpu.memory_space<vmem>>, vector<1x16x128xf32>,
    return
  }
  func.func @transform_0(%arg0: i32, %arg1: i32) -> (i32, i32, i32) {
    %c0_i32 = arith.constant 0 : i32
    %c0_i32_0 = arith.constant 0 : i32
    %c0_i32_1 = arith.constant 0 : i32
    return %arg0, %c0_i32, %c0_i32_0 : i32, i32, i32
  }
  func.func @transform_1(%arg0: i32, %arg1: i32) -> (i32, i32) {
    %c0_i32 = arith.constant 0 : i32
    %c0_i32_0 = arith.constant 0 : i32
    %c0_i32_1 = arith.constant 0 : i32
    return %c0_i32, %c0_i32_0 : i32, i32
  }
  func.func @transform_2(%arg0: i32, %arg1: i32) -> (i32, i32) {
    %c0_i32 = arith.constant 0 : i32
    %c0_i32_0 = arith.constant 0 : i32
    %c0_i32_1 = arith.constant 0 : i32
    return %c0_i32, %c0_i32_0 : i32, i32
  }
  func.func @transform_3(%arg0: i32, %arg1: i32) -> (i32, i32, i32) {
    %c0_i32 = arith.constant 0 : i32
    %c0_i32_0 = arith.constant 0 : i32
    %c0_i32_1 = arith.constant 0 : i32
    %c0_i32_2 = arith.constant 0 : i32
    return %c0_i32, %c0_i32_0, %c0_i32_1 : i32, i32, i32
  }
  func.func @transform_4(%arg0: i32, %arg1: i32) -> (i32, i32) {
    %c0_i32 = arith.constant 0 : i32
    %c0_i32_0 = arith.constant 0 : i32
    %c0_i32_1 = arith.constant 0 : i32
    return %c0_i32, %c0_i32_0 : i32, i32
  }
  func.func @transform_5(%arg0: i32, %arg1: i32) -> (i32, i32, i32) {
    %c0_i32 = arith.constant 0 : i32
    %c0_i32_0 = arith.constant 0 : i32
    return %arg0, %arg1, %c0_i32 : i32, i32, i32
  }
}

</mosaic_0001>

<llo_original>
// kernel: tpu_custom_call.1
$region0: #{tpu_custom_call.1}
  #allocation0 [shape = 'u32[]', space=smem, size = 0x4, offset = 0x4, fixed_abs, tag = 'smem constant byte address 0x4 - core index']
  #allocation1 [shape = 'u32[144,128]{1,0:T(1,128)}', space=vmem, size = 0x12000, scoped, tag = 'internal scratch']
  %s0 = inlined_call_operand.vmem [shape: f32[2,26,128], index: 0, kind: input, shape index: {}]
  %s1 = inlined_call_operand.hbm [shape: f32[384,256], index: 1, kind: input, shape index: {}]
  %s2 = inlined_call_operand.vmem [shape: f32[1,256], index: 2, kind: input, shape index: {}]
  %s3 = inlined_call_operand.hbm [shape: f32[3,128,128], index: 3, kind: input, shape index: {}]
  %s4 = inlined_call_operand.vmem [shape: f32[1,128], index: 4, kind: input, shape index: {}]
  %s5 = inlined_call_operand.hbm [shape: f32[2,16,128], index: 5, kind: output, shape index: {}]
  %s6 = sld [smem:[#allocation0]]
  $region61: #{tpu_custom_call.1} parent=0
    _
  %s8 = ssub.s32 1, %s6
  %s9 = scalar_select 0, %s8, %s6
  $region1: #{tpu_custom_call.1} parent=0
    #allocation2 [shape = 'u8[393216]{0}', space=vmem, size = 0x60000, scoped, tag = 'input window, operand 1, single buffered']
    #allocation3 [shape = 's32[2]{0}', space=sflag, size = 0x8, scoped, tag = 'scoped memory for tpu_custom_call.1']
    #allocation4 [shape = 's32[2]{0}', space=sflag, size = 0x8, scoped, tag = 'scoped memory for tpu_custom_call.1']
    #allocation5 [shape = 'u8[196608]{0}', space=vmem, size = 0x30000, scoped, tag = 'input window, operand 3, single buffered']
    #allocation6 [shape = 's32[1]{0}', space=sflag, size = 0x4, scoped, tag = 'scoped memory for tpu_custom_call.1']
    #allocation7 [shape = 'u8[16384]{0}', space=vmem, size = 0x4000, scoped, tag = 'output window, operand 0']
    %10 = vsyncpa [#allocation3], 0
    %11 = vsyncpa [#allocation6], 0
    %12 = vsyncpa [#allocation4], 0
    %s13 = scalar_lea.sflag [#allocation4], 1
    %14 = vsyncpa %s13, 0
    loop: start=0, step=1, limit=4
    $region2: #{tpu_custom_call.1} parent=1 // loop_pre_header
      _
    $region3: #{tpu_custom_call.1} parent=1 // loop_header
      %s16 = sphi 0, %s20
      %p17 = scmp.ge.s32.totalorder %s16, 4
      %s23 = sphi 0, %s35
      %s24 = sphi 0, %s31
      %s25 = sphi 0, %s23
      %s26 = sphi 0, %s24
      %s27 = sphi 0, %s25
      %s28 = sphi 0, %s26
      %s38 = sphi 0, %s40
      %s41 = sphi 0, %s38
      %s42 = sphi 0, %s41
      %s58 = sphi 0, %s42
      %s62 = sphi 0, %s62
      %s64 = sphi 0, %s62
      %s65 = sphi 0, %s64
      %s79 = sphi 0, %s65
      %s83 = sphi 0, %s83
      %s85 = sphi 0, %s83
      %s86 = sphi 0, %s85
      %s100 = sphi 0, %s86
      %s104 = sphi 0, %s104
      %s106 = sphi 0, %s104
      %s107 = sphi 0, %s106
      %s121 = sphi 0, %s107
      %s125 = sphi 0, %s125
      %s127 = sphi 0, %s125
      %s128 = sphi 0, %s127
      %s142 = sphi 0, %s128
      %s150 = sphi 0, %s152
      %s153 = sphi 0, %s150
      %s154 = sphi 0, %s153
      %s170 = sphi 0, %s154
    $region4: #{tpu_custom_call.1} parent=1 // loop_header_branch
      %19 = sbr.rel (%p17) target = $region8
    $region5: #{tpu_custom_call.1} parent=1 // loop_body
      %s21 = ssub.s32 %s16, 1
      %s22 = ssub.s32 %s16, 2
      %s29 = sadd.s32 1, %s24
      %p30 = scmp.ge.s32.totalorder %s29, 1
      %s31 = scalar_select %p30, 0, %s29
      %s32 = sadd.s32 1, %s23
      %s33 = scalar_select %p30, %s32, %s23
      %p34 = scmp.ge.s32.totalorder %s33, 2
      %s35 = scalar_select %p34, 0, %s33
      %s36 = ssub.s32 %s23, %s35
      %p37 = scmp.eq.s32.totalorder %s36, 0
      %s39 = sadd.s32 %s38, 1
      %s40 = scalar_select %p37, %s38, %s39
      %p43 = pneg %p37
      %p44 = scmp.eq.s32.totalorder %s16, 1
      %p45 = por %p43, %p44
      %p46 = scmp.ne.s32.totalorder %s38, %s41
      %p47 = scmp.eq.s32.totalorder %s16, 0
      %p48 = por %p46, %p47
      %p49 = scmp.ne.s32.totalorder %s38, %s41
      %p50 = scmp.eq.s32.totalorder %s21, 1
      %p51 = por %p49, %p50
      %p52 = scmp.ne.s32.totalorder %s41, %s42
      %p53 = scmp.eq.s32.totalorder %s21, 0
      %p54 = por %p52, %p53
      %p55 = scmp.ne.s32.totalorder %s41, %s42
      %p56 = scmp.eq.s32.totalorder %s22, 1
      %p57 = por %p55, %p56
      %p59 = scmp.ne.s32.totalorder %s42, %s58
      %p60 = scmp.eq.s32.totalorder %s22, 0
      %p61 = por %p59, %p60
      %s63 = sadd.s32 %s62, 1
      %p66 = scmp.eq.s32.totalorder %s16, 1
      %p67 = scmp.ne.s32.totalorder %s62, %s64
      %p68 = scmp.eq.s32.totalorder %s16, 0
      %p69 = por %p67, %p68
      %p70 = scmp.ne.s32.totalorder %s62, %s64
      %p71 = scmp.eq.s32.totalorder %s21, 1
      %p72 = por %p70, %p71
      %p73 = scmp.ne.s32.totalorder %s64, %s65
      %p74 = scmp.eq.s32.totalorder %s21, 0
      %p75 = por %p73, %p74
      %p76 = scmp.ne.s32.totalorder %s64, %s65
      %p77 = scmp.eq.s32.totalorder %s22, 1
      %p78 = por %p76, %p77
      %p80 = scmp.ne.s32.totalorder %s65, %s79
      %p81 = scmp.eq.s32.totalorder %s22, 0
      %p82 = por %p80, %p81
      %s84 = sadd.s32 %s83, 1
      %p87 = scmp.eq.s32.totalorder %s16, 1
      %p88 = scmp.ne.s32.totalorder %s83, %s85
      %p89 = scmp.eq.s32.totalorder %s16, 0
      %p90 = por %p88, %p89
      %p91 = scmp.ne.s32.totalorder %s83, %s85
      %p92 = scmp.eq.s32.totalorder %s21, 1
      %p93 = por %p91, %p92
      %p94 = scmp.ne.s32.totalorder %s85, %s86
      %p95 = scmp.eq.s32.totalorder %s21, 0
      %p96 = por %p94, %p95
      %p97 = scmp.ne.s32.totalorder %s85, %s86
      %p98 = scmp.eq.s32.totalorder %s22, 1
      %p99 = por %p97, %p98
      %p101 = scmp.ne.s32.totalorder %s86, %s100
      %p102 = scmp.eq.s32.totalorder %s22, 0
      %p103 = por %p101, %p102
      %s105 = sadd.s32 %s104, 1
      %p108 = scmp.eq.s32.totalorder %s16, 1
      %p109 = scmp.ne.s32.totalorder %s104, %s106
      %p110 = scmp.eq.s32.totalorder %s16, 0
      %p111 = por %p109, %p110
      %p112 = scmp.ne.s32.totalorder %s104, %s106
      %p113 = scmp.eq.s32.totalorder %s21, 1
      %p114 = por %p112, %p113
      %p115 = scmp.ne.s32.totalorder %s106, %s107
      %p116 = scmp.eq.s32.totalorder %s21, 0
      %p117 = por %p115, %p116
      %p118 = scmp.ne.s32.totalorder %s106, %s107
      %p119 = scmp.eq.s32.totalorder %s22, 1
      %p120 = por %p118, %p119
      %p122 = scmp.ne.s32.totalorder %s107, %s121
      %p123 = scmp.eq.s32.totalorder %s22, 0
      %p124 = por %p122, %p123
      %s126 = sadd.s32 %s125, 1
      %p129 = scmp.eq.s32.totalorder %s16, 1
      %p130 = scmp.ne.s32.totalorder %s125, %s127
      %p131 = scmp.eq.s32.totalorder %s16, 0
      %p132 = por %p130, %p131
      %p133 = scmp.ne.s32.totalorder %s125, %s127
      %p134 = scmp.eq.s32.totalorder %s21, 1
      %p135 = por %p133, %p134
      %p136 = scmp.ne.s32.totalorder %s127, %s128
      %p137 = scmp.eq.s32.totalorder %s21, 0
      %p138 = por %p136, %p137
      %p139 = scmp.ne.s32.totalorder %s127, %s128
      %p140 = scmp.eq.s32.totalorder %s22, 1
      %p141 = por %p139, %p140
      %p143 = scmp.ne.s32.totalorder %s128, %s142
      %p144 = scmp.eq.s32.totalorder %s22, 0
      %p145 = por %p143, %p144
      %s146 = ssub.s32 %s23, %s35
      %s147 = ssub.s32 %s24, %s31
      %s148 = sor.u32 %s146, %s147
      %p149 = scmp.eq.s32.totalorder %s148, 0
      %s151 = sadd.s32 %s150, 1
      %s152 = scalar_select %p149, %s150, %s151
      %p155 = pneg %p149
      %p156 = scmp.eq.s32.totalorder %s16, 1
      %p157 = por %p155, %p156
      %p158 = scmp.ne.s32.totalorder %s150, %s153
      %p159 = scmp.eq.s32.totalorder %s16, 0
      %p160 = por %p158, %p159
      %p161 = scmp.ne.s32.totalorder %s150, %s153
      %p162 = scmp.eq.s32.totalorder %s21, 1
      %p163 = por %p161, %p162
      %p164 = scmp.ne.s32.totalorder %s153, %s154
      %p165 = scmp.eq.s32.totalorder %s21, 0
      %p166 = por %p164, %p165
      %p167 = scmp.ne.s32.totalorder %s153, %s154
      %p168 = scmp.eq.s32.totalorder %s22, 1
      %p169 = por %p167, %p168
      %p171 = scmp.ne.s32.totalorder %s154, %s170
      %p172 = scmp.eq.s32.totalorder %s22, 0
      %p173 = por %p171, %p172
      %p174 = scmp.le.s32.totalorder 1, %s16
      %p175 = scmp.lt.s32.totalorder %s16, 3
      %p176 = pnand %p174, %p175
      %p177 = pneg %p176
      // Predicated region
      $region9: #{tpu_custom_call.1} parent=5 // pred_check
        _
      $region10: #{tpu_custom_call.1} parent=5 // pred_check_branch
        %179 = sbr.rel (%p176) target = $region12
      $region11: #{tpu_custom_call.1} parent=5 // pred_region
        %s180 = ssub.s32 %s16, 1
        // Predicated region
        $region13: #{tpu_custom_call.1} parent=11 // pred_check
          %p181 = pneg %p75
        $region14: #{tpu_custom_call.1} parent=11 // pred_check_branch
          %183 = sbr.rel (%p181) target = $region16
        $region15: #{tpu_custom_call.1} parent=11 // pred_region
          %s185 = ssub.s32 12288, 12288
          %186 = vsyncadd [#allocation3], %s185
          %s187 = sshll.u32 [#allocation2], 4
          %s188 = int_to_ptr.vmem [resolvable:$true] %s187
          %193 = dma.hbm_to_vmem [thread:$0]  %s1, 12288, %s188, [#allocation3], 256, 256, 16
        $region16: #{tpu_custom_call.1} parent=11 // pred_fallthru
          _
        // Predicated region
        $region17: #{tpu_custom_call.1} parent=11 // pred_check
          %p194 = pneg %p96
        $region18: #{tpu_custom_call.1} parent=11 // pred_check_branch
          %196 = sbr.rel (%p194) target = $region20
        $region19: #{tpu_custom_call.1} parent=11 // pred_region
          _
        $region20: #{tpu_custom_call.1} parent=11 // pred_fallthru
          _
        // Predicated region
        $region21: #{tpu_custom_call.1} parent=11 // pred_check
          %p197 = pneg %p117
        $region22: #{tpu_custom_call.1} parent=11 // pred_check_branch
          %199 = sbr.rel (%p197) target = $region24
        $region23: #{tpu_custom_call.1} parent=11 // pred_region
          %s201 = ssub.s32 6144, 6144
          %202 = vsyncadd [#allocation6], %s201
          %s203 = sshll.u32 [#allocation5], 4
          %s204 = int_to_ptr.vmem [resolvable:$true] %s203
          %209 = dma.hbm_to_vmem [thread:$0]  %s3, 6144, %s204, [#allocation6], 128, 128, 8
        $region24: #{tpu_custom_call.1} parent=11 // pred_fallthru
          _
        // Predicated region
        $region25: #{tpu_custom_call.1} parent=11 // pred_check
          %p210 = pneg %p138
        $region26: #{tpu_custom_call.1} parent=11 // pred_check_branch
          %212 = sbr.rel (%p210) target = $region28
        $region27: #{tpu_custom_call.1} parent=11 // pred_region
          _
        $region28: #{tpu_custom_call.1} parent=11 // pred_fallthru
          _
      $region12: #{tpu_custom_call.1} parent=5 // pred_fallthru
        _
      %p213 = scmp.lt.s32.totalorder %s16, 2
      // Predicated region
      $region29: #{tpu_custom_call.1} parent=5 // pred_check
        %p214 = pneg %p213
      $region30: #{tpu_custom_call.1} parent=5 // pred_check_branch
        %216 = sbr.rel (%p214) target = $region32
      $region31: #{tpu_custom_call.1} parent=5 // pred_region
        // Predicated region
        $region33: #{tpu_custom_call.1} parent=31 // pred_check
          %p217 = pneg %p48
        $region34: #{tpu_custom_call.1} parent=31 // pred_check_branch
          %219 = sbr.rel (%p217) target = $region36
        $region35: #{tpu_custom_call.1} parent=31 // pred_region
          %p220 = scmp.lt.s32.totalorder %s23, 1
          %s221 = scalar_select %p220, %s23, 1
          %s222 = smul.addr %s221, 4
          %s223 = smul.addr %s222, 8
          %s224 = scalar_lea.vmem %s0, %s223
        $region36: #{tpu_custom_call.1} parent=31 // pred_fallthru
          _
      $region32: #{tpu_custom_call.1} parent=5 // pred_fallthru
        _
      %p225 = scmp.le.s32.totalorder 1, %s16
      %p226 = scmp.lt.s32.totalorder %s16, 3
      %p227 = pnand %p225, %p226
      %p228 = pneg %p227
      // Predicated region
      $region37: #{tpu_custom_call.1} parent=5 // pred_check
        _
      $region38: #{tpu_custom_call.1} parent=5 // pred_check_branch
        %230 = sbr.rel (%p227) target = $region40
      $region39: #{tpu_custom_call.1} parent=5 // pred_region
        %s231 = ssub.s32 %s16, 1
        // Predicated region
        $region41: #{tpu_custom_call.1} parent=39 // pred_check
          %p232 = pneg %p75
        $region42: #{tpu_custom_call.1} parent=39 // pred_check_branch
          %234 = sbr.rel (%p232) target = $region44
        $region43: #{tpu_custom_call.1} parent=39 // pred_region
          %235 = dma.done [#allocation3], 12288
        $region44: #{tpu_custom_call.1} parent=39 // pred_fallthru
          _
        // Predicated region
        $region45: #{tpu_custom_call.1} parent=39 // pred_check
          %p236 = pneg %p117
        $region46: #{tpu_custom_call.1} parent=39 // pred_check_branch
          %238 = sbr.rel (%p236) target = $region48
        $region47: #{tpu_custom_call.1} parent=39 // pred_region
          %239 = dma.done [#allocation6], 6144
        $region48: #{tpu_custom_call.1} parent=39 // pred_fallthru
          _
        %p240 = scmp.lt.s32.totalorder %s25, 1
        %s241 = scalar_select %p240, %s25, 1
        %s242 = smul.addr %s241, 4
        %s243 = smul.addr %s242, 8
        %s244 = scalar_lea.vmem %s0, %s243
        %p245 = pneg %p54
        %p246 = pneg %p51
        %p247 = pneg %p75
        %p248 = pneg %p72
        %p249 = pneg %p96
        %p250 = pneg %p93
        %p251 = pneg %p117
        %p252 = pneg %p114
        %p253 = pneg %p138
        %p254 = pneg %p135
        %p255 = pneg %p166
        %p256 = pneg %p163
        %s257 = sand.u32 %s153, 1
        %s258 = scalar_lea.sflag [#allocation4], %s257
        %s259 = sand.u32 %s153, 1
        %s260 = smul.addr %s259, 16
        %s261 = scalar_lea.vmem [#allocation7], %s260
        %p262 = scmp.lt.s32.totalorder %s25, 1
        %s263 = scalar_select %p262, %s25, 1
        %s264 = smul.addr %s263, 4
        %s265 = smul.addr %s264, 8
        %s266 = scalar_lea.vmem %s0, %s265
        %s267 = smul.u32 2, %s26
        %s268 = smul.u32 %s26, 16
        %s269 = scalar_lea.vmem %s266, %s268
        %v270 = vld [vmem:[%s269] sm:$0xff]
        %v271 = vld [vmem:[%s269 + $0x8] sm:$0xff]
        %v272 = vld [vmem:[%s269 + $0x10] sm:$0xff]
        %v273 = vld [vmem:[%s269 + $0x18] sm:$0x3]
        %vm278 = vcmask 1046528
        %v279 = vrot.slane %v270, 1
        %v280 = vrot.slane %v271, 1
        %v281 = vsel %vm278, %v279, %v280
        %v282 = vrot.slane %v272, 1
        %v283 = vsel %vm278, %v280, %v282
        %v284 = vrot.slane %v273, 1
        %v285 = vsel %vm278, %v282, %v284
        %vm289 = vcmask 1045504
        %v290 = vrot.slane %v270, 2
        %v291 = vrot.slane %v271, 2
        %v292 = vsel %vm289, %v290, %v291
        %v293 = vrot.slane %v272, 2
        %v294 = vsel %vm289, %v291, %v293
        %v295 = vrot.slane %v273, 2
        %v296 = vsel %vm289, %v293, %v295
        %v300 = vld [vmem:[#allocation2] sm:$0xff]
        %v301 = vld [vmem:[#allocation2 + $0x8] sm:$0xff]
        %v302 = vld [vmem:[#allocation2 + $0x10] sm:$0xff]
        %v303 = vld [vmem:[#allocation2 + $0x18] sm:$0xff]
        %v304 = vld [vmem:[#allocation2 + $0x20] sm:$0xff]
        %v305 = vld [vmem:[#allocation2 + $0x28] sm:$0xff]
        %v306 = vld [vmem:[#allocation2 + $0x30] sm:$0xff]
        %v307 = vld [vmem:[#allocation2 + $0x38] sm:$0xff]
        %v308 = vld [vmem:[#allocation2 + $0x40] sm:$0xff]
        %v309 = vld [vmem:[#allocation2 + $0x48] sm:$0xff]
        %v310 = vld [vmem:[#allocation2 + $0x50] sm:$0xff]
        %v311 = vld [vmem:[#allocation2 + $0x58] sm:$0xff]
        %v312 = vld [vmem:[#allocation2 + $0x60] sm:$0xff]
        %v313 = vld [vmem:[#allocation2 + $0x68] sm:$0xff]
        %v314 = vld [vmem:[#allocation2 + $0x70] sm:$0xff]
        %v315 = vld [vmem:[#allocation2 + $0x78] sm:$0xff]
        %v316 = vld [vmem:[#allocation2 + $0x80] sm:$0xff]
        %v317 = vld [vmem:[#allocation2 + $0x88] sm:$0xff]
        %v318 = vld [vmem:[#allocation2 + $0x90] sm:$0xff]
        %v319 = vld [vmem:[#allocation2 + $0x98] sm:$0xff]
        %v320 = vld [vmem:[#allocation2 + $0xa0] sm:$0xff]
        %v321 = vld [vmem:[#allocation2 + $0xa8] sm:$0xff]
        %v322 = vld [vmem:[#allocation2 + $0xb0] sm:$0xff]
        %v323 = vld [vmem:[#allocation2 + $0xb8] sm:$0xff]
        %v324 = vld [vmem:[#allocation2 + $0xc0] sm:$0xff]
        %v325 = vld [vmem:[#allocation2 + $0xc8] sm:$0xff]
        %v326 = vld [vmem:[#allocation2 + $0xd0] sm:$0xff]
        %v327 = vld [vmem:[#allocation2 + $0xd8] sm:$0xff]
        %v328 = vld [vmem:[#allocation2 + $0xe0] sm:$0xff]
        %v329 = vld [vmem:[#allocation2 + $0xe8] sm:$0xff]
        %v330 = vld [vmem:[#allocation2 + $0xf0] sm:$0xff]
        %v331 = vld [vmem:[#allocation2 + $0xf8] sm:$0xff]
        %v332 = vld [vmem:[#allocation2 + $0x100] sm:$0xff]
        %v333 = vld [vmem:[#allocation2 + $0x108] sm:$0xff]
        %v334 = vld [vmem:[#allocation2 + $0x110] sm:$0xff]
        %v335 = vld [vmem:[#allocation2 + $0x118] sm:$0xff]
        %v336 = vld [vmem:[#allocation2 + $0x120] sm:$0xff]
        %v337 = vld [vmem:[#allocation2 + $0x128] sm:$0xff]
        %v338 = vld [vmem:[#allocation2 + $0x130] sm:$0xff]
        %v339 = vld [vmem:[#allocation2 + $0x138] sm:$0xff]
        %v340 = vld [vmem:[#allocation2 + $0x140] sm:$0xff]
        %v341 = vld [vmem:[#allocation2 + $0x148] sm:$0xff]
        %v342 = vld [vmem:[#allocation2 + $0x150] sm:$0xff]
        %v343 = vld [vmem:[#allocation2 + $0x158] sm:$0xff]
        %v344 = vld [vmem:[#allocation2 + $0x160] sm:$0xff]
        %v345 = vld [vmem:[#allocation2 + $0x168] sm:$0xff]
        %v346 = vld [vmem:[#allocation2 + $0x170] sm:$0xff]
        %v347 = vld [vmem:[#allocation2 + $0x178] sm:$0xff]
        %v348 = vld [vmem:[#allocation2 + $0x180] sm:$0xff]
        %v349 = vld [vmem:[#allocation2 + $0x188] sm:$0xff]
        %v350 = vld [vmem:[#allocation2 + $0x190] sm:$0xff]
        %v351 = vld [vmem:[#allocation2 + $0x198] sm:$0xff]
        %v352 = vld [vmem:[#allocation2 + $0x1a0] sm:$0xff]
        %v353 = vld [vmem:[#allocation2 + $0x1a8] sm:$0xff]
        %v354 = vld [vmem:[#allocation2 + $0x1b0] sm:$0xff]
        %v355 = vld [vmem:[#allocation2 + $0x1b8] sm:$0xff]
        %v356 = vld [vmem:[#allocation2 + $0x1c0] sm:$0xff]
        %v357 = vld [vmem:[#allocation2 + $0x1c8] sm:$0xff]
        %v358 = vld [vmem:[#allocation2 + $0x1d0] sm:$0xff]
        %v359 = vld [vmem:[#allocation2 + $0x1d8] sm:$0xff]
        %v360 = vld [vmem:[#allocation2 + $0x1e0] sm:$0xff]
        %v361 = vld [vmem:[#allocation2 + $0x1e8] sm:$0xff]
        %v362 = vld [vmem:[#allocation2 + $0x1f0] sm:$0xff]
        %v363 = vld [vmem:[#allocation2 + $0x1f8] sm:$0xff]
        %v364 = vld [vmem:[#allocation2 + $0x200] sm:$0xff]
        %v365 = vld [vmem:[#allocation2 + $0x208] sm:$0xff]
        %v366 = vld [vmem:[#allocation2 + $0x210] sm:$0xff]
        %v367 = vld [vmem:[#allocation2 + $0x218] sm:$0xff]
        %v368 = vld [vmem:[#allocation2 + $0x220] sm:$0xff]
        %v369 = vld [vmem:[#allocation2 + $0x228] sm:$0xff]
        %v370 = vld [vmem:[#allocation2 + $0x230] sm:$0xff]
        %v371 = vld [vmem:[#allocation2 + $0x238] sm:$0xff]
        %v372 = vld [vmem:[#allocation2 + $0x240] sm:$0xff]
        %v373 = vld [vmem:[#allocation2 + $0x248] sm:$0xff]
        %v374 = vld [vmem:[#allocation2 + $0x250] sm:$0xff]
        %v375 = vld [vmem:[#allocation2 + $0x258] sm:$0xff]
        %v376 = vld [vmem:[#allocation2 + $0x260] sm:$0xff]
        %v377 = vld [vmem:[#allocation2 + $0x268] sm:$0xff]
        %v378 = vld [vmem:[#allocation2 + $0x270] sm:$0xff]
        %v379 = vld [vmem:[#allocation2 + $0x278] sm:$0xff]
        %v380 = vld [vmem:[#allocation2 + $0x280] sm:$0xff]
        %v381 = vld [vmem:[#allocation2 + $0x288] sm:$0xff]
        %v382 = vld [vmem:[#allocation2 + $0x290] sm:$0xff]
        %v383 = vld [vmem:[#allocation2 + $0x298] sm:$0xff]
        %v384 = vld [vmem:[#allocation2 + $0x2a0] sm:$0xff]
        %v385 = vld [vmem:[#allocation2 + $0x2a8] sm:$0xff]
        %v386 = vld [vmem:[#allocation2 + $0x2b0] sm:$0xff]
        %v387 = vld [vmem:[#allocation2 + $0x2b8] sm:$0xff]
        %v388 = vld [vmem:[#allocation2 + $0x2c0] sm:$0xff]
        %v389 = vld [vmem:[#allocation2 + $0x2c8] sm:$0xff]
        %v390 = vld [vmem:[#allocation2 + $0x2d0] sm:$0xff]
        %v391 = vld [vmem:[#allocation2 + $0x2d8] sm:$0xff]
        %v392 = vld [vmem:[#allocation2 + $0x2e0] sm:$0xff]
        %v393 = vld [vmem:[#allocation2 + $0x2e8] sm:$0xff]
        %v394 = vld [vmem:[#allocation2 + $0x2f0] sm:$0xff]
        %v395 = vld [vmem:[#allocation2 + $0x2f8] sm:$0xff]
        %v396 = vld [vmem:[%s2] sm:$0x3]
        %v398 = vlaneseq
        %v399 = vshrl.u32 %v398, 7
        %v400 = vsub.s32 0, %v399
        %v401 = vrot.slane %v396, %v400
        %v402 = vlaneseq
        %v403 = vshrl.u32 %v402, 7
        %v404 = vsub.s32 1, %v403
        %v405 = vrot.slane %v396, %v404
        %408 = vmatprep.subr.mxu0 %v301
        %409 = vmatpush1.msra.mxu0 %v300
        %410 = vmatprep.subr.mxu0 %v303
        %411 = vmatpush1.msra.mxu0 %v302
        %412 = vmatprep.subr.mxu0 %v305
        %413 = vmatpush1.msra.mxu0 %v304
        %414 = vmatprep.subr.mxu0 %v307
        %415 = vmatpush1.msra.mxu0 %v306
        %416 = vmatprep.subr.mxu0 %v309
        %417 = vmatpush1.msra.mxu0 %v308
        %418 = vmatprep.subr.mxu0 %v311
        %419 = vmatpush1.msra.mxu0 %v310
        %420 = vmatprep.subr.mxu0 %v313
        %421 = vmatpush1.msra.mxu0 %v312
        %422 = vmatprep.subr.mxu0 %v315
        %423 = vmatpush1.msra.mxu0 %v314
        %424 = vmatprep.subr.mxu0 %v317
        %425 = vmatpush1.msra.mxu0 %v316
        %426 = vmatprep.subr.mxu0 %v319
        %427 = vmatpush1.msra.mxu0 %v318
        %428 = vmatprep.subr.mxu0 %v321
        %429 = vmatpush1.msra.mxu0 %v320
        %430 = vmatprep.subr.mxu0 %v323
        %431 = vmatpush1.msra.mxu0 %v322
        %432 = vmatprep.subr.mxu0 %v325
        %433 = vmatpush1.msra.mxu0 %v324
        %434 = vmatprep.subr.mxu0 %v327
        %435 = vmatpush1.msra.mxu0 %v326
        %436 = vmatprep.subr.mxu0 %v329
        %437 = vmatpush1.msra.mxu0 %v328
        %438 = vmatprep.subr.mxu0 %v331
        %439 = vmatpush1.msra.mxu0 %v330
        %440 = vmatprep.subr.mxu0 %v333
        %441 = vmatpush1.msra.mxu0 %v332
        %442 = vmatprep.subr.mxu0 %v335
        %443 = vmatpush1.msra.mxu0 %v334
        %444 = vmatprep.subr.mxu0 %v337
        %445 = vmatpush1.msra.mxu0 %v336
        %446 = vmatprep.subr.mxu0 %v339
        %447 = vmatpush1.msra.mxu0 %v338
        %448 = vmatprep.subr.mxu0 %v341
        %449 = vmatpush1.msra.mxu0 %v340
        %450 = vmatprep.subr.mxu0 %v343
        %451 = vmatpush1.msra.mxu0 %v342
        %452 = vmatprep.subr.mxu0 %v345
        %453 = vmatpush1.msra.mxu0 %v344
        %454 = vmatprep.subr.mxu0 %v347
        %455 = vmatpush1.msra.mxu0 %v346
        %456 = vmatprep.subr.mxu0 %v349
        %457 = vmatpush1.msra.mxu0 %v348
        %458 = vmatprep.subr.mxu0 %v351
        %459 = vmatpush1.msra.mxu0 %v350
        %460 = vmatprep.subr.mxu0 %v353
        %461 = vmatpush1.msra.mxu0 %v352
        %462 = vmatprep.subr.mxu0 %v355
        %463 = vmatpush1.msra.mxu0 %v354
        %464 = vmatprep.subr.mxu0 %v357
        %465 = vmatpush1.msra.mxu0 %v356
        %466 = vmatprep.subr.mxu0 %v359
        %467 = vmatpush1.msra.mxu0 %v358
        %468 = vmatprep.subr.mxu0 %v361
        %469 = vmatpush1.msra.mxu0 %v360
        %470 = vmatprep.subr.mxu0 %v363
        %471 = vmatpush1.msra.mxu0 %v362
        %472 = vmatprep.mubr.f32.mxu0 %v281
        %473 = vmatmul.mubr.f32.gmra.mrb[0].mxu0 %v270
        %v474 = vpop.f32.mrb[0].mxu0
        %v475 = vadd.f32 %v401, %v474
        %v476 = vpop.f32.mrb[0].mxu0
        %v477 = vadd.f32 %v405, %v476
        %478 = vmatprep.mubr.f32.mxu0 %v283
        %479 = vmatmul.mubr.f32.gmra.mrb[0].mxu0 %v271
        %v480 = vpop.f32.mrb[0].mxu0
        %v481 = vadd.f32 %v401, %v480
        %v482 = vpop.f32.mrb[0].mxu0
        %v483 = vadd.f32 %v405, %v482
        %484 = vmatprep.mubr.f32.mxu0 %v285
        %485 = vmatmul.mubr.f32.gmra.mrb[0].mxu0 %v272
        %v486 = vpop.f32.mrb[0].mxu0
        %v487 = vadd.f32 %v401, %v486
        %v488 = vpop.f32.mrb[0].mxu0
        %v489 = vadd.f32 %v405, %v488
        %490 = vdwg.mxu0
        %491 = vmatprep.subr.mxu0 %v365
        %492 = vmatpush1.msra.mxu0 %v364
        %493 = vmatprep.subr.mxu0 %v367
        %494 = vmatpush1.msra.mxu0 %v366
        %495 = vmatprep.subr.mxu0 %v369
        %496 = vmatpush1.msra.mxu0 %v368
        %497 = vmatprep.subr.mxu0 %v371
        %498 = vmatpush1.msra.mxu0 %v370
        %499 = vmatprep.subr.mxu0 %v373
        %500 = vmatpush1.msra.mxu0 %v372
        %501 = vmatprep.subr.mxu0 %v375
        %502 = vmatpush1.msra.mxu0 %v374
        %503 = vmatprep.subr.mxu0 %v377
        %504 = vmatpush1.msra.mxu0 %v376
        %505 = vmatprep.subr.mxu0 %v379
        %506 = vmatpush1.msra.mxu0 %v378
        %507 = vmatprep.subr.mxu0 %v381
        %508 = vmatpush1.msra.mxu0 %v380
        %509 = vmatprep.subr.mxu0 %v383
        %510 = vmatpush1.msra.mxu0 %v382
        %511 = vmatprep.subr.mxu0 %v385
        %512 = vmatpush1.msra.mxu0 %v384
        %513 = vmatprep.subr.mxu0 %v387
        %514 = vmatpush1.msra.mxu0 %v386
        %515 = vmatprep.subr.mxu0 %v389
        %516 = vmatpush1.msra.mxu0 %v388
        %517 = vmatprep.subr.mxu0 %v391
        %518 = vmatpush1.msra.mxu0 %v390
        %519 = vmatprep.subr.mxu0 %v393
        %520 = vmatpush1.msra.mxu0 %v392
        %521 = vmatprep.subr.mxu0 %v395
        %522 = vmatpush1.msra.mxu0 %v394
        %523 = vmatprep.subr.mxu0 0.0
        %524 = vmatpush1.msra.mxu0 0.0
        %525 = vmatprep.subr.mxu0 0.0
        %526 = vmatpush1.msra.mxu0 0.0
        %527 = vmatprep.subr.mxu0 0.0
        %528 = vmatpush1.msra.mxu0 0.0
        %529 = vmatprep.subr.mxu0 0.0
        %530 = vmatpush1.msra.mxu0 0.0
        %531 = vmatprep.subr.mxu0 0.0
        %532 = vmatpush1.msra.mxu0 0.0
        %533 = vmatprep.subr.mxu0 0.0
        %534 = vmatpush1.msra.mxu0 0.0
        %535 = vmatprep.subr.mxu0 0.0
        %536 = vmatpush1.msra.mxu0 0.0
        %537 = vmatprep.subr.mxu0 0.0
        %538 = vmatpush1.msra.mxu0 0.0
        %539 = vmatprep.subr.mxu0 0.0
        %540 = vmatpush1.msra.mxu0 0.0
        %541 = vmatprep.subr.mxu0 0.0
        %542 = vmatpush1.msra.mxu0 0.0
        %543 = vmatprep.subr.mxu0 0.0
        %544 = vmatpush1.msra.mxu0 0.0
        %545 = vmatprep.subr.mxu0 0.0
        %546 = vmatpush1.msra.mxu0 0.0
        %547 = vmatprep.subr.mxu0 0.0
        %548 = vmatpush1.msra.mxu0 0.0
        %549 = vmatprep.subr.mxu0 0.0
        %550 = vmatpush1.msra.mxu0 0.0
        %551 = vmatprep.subr.mxu0 0.0
        %552 = vmatpush1.msra.mxu0 0.0
        %553 = vmatprep.subr.mxu0 0.0
        %554 = vmatpush1.msra.mxu0 0.0
        %555 = vmatprep.mubr.f32.mxu0 0.0
        %556 = vmatmul.mubr.f32.gmra.mrb[0].mxu0 %v292
        %v557 = vpop.f32.mrb[0].mxu0
        %v558 = vadd.f32 %v475, %v557
        %v559 = vpop.f32.mrb[0].mxu0
        %v560 = vadd.f32 %v477, %v559
        %561 = vmatprep.mubr.f32.mxu0 0.0
        %562 = vmatmul.mubr.f32.gmra.mrb[0].mxu0 %v294
        %v563 = vpop.f32.mrb[0].mxu0
        %v564 = vadd.f32 %v481, %v563
        %v565 = vpop.f32.mrb[0].mxu0
        %v566 = vadd.f32 %v483, %v565
        %567 = vmatprep.mubr.f32.mxu0 0.0
        %568 = vmatmul.mubr.f32.gmra.mrb[0].mxu0 %v296
        %v569 = vpop.f32.mrb[0].mxu0
        %v570 = vadd.f32 %v487, %v569
        %v571 = vpop.f32.mrb[0].mxu0
        %v572 = vadd.f32 %v489, %v571
        %573 = vdwg.mxu0
        %v574 = vxor.u32 %v558, 2147483648
        %v575 = vxor.u32 %v564, 2147483648
        %v576 = vxor.u32 %v570, 2147483648
        %v577 = vmul.f32 %v574, 1.442695
        %v578 = vpow.pop %v577
        %v579 = vmul.f32 %v575, 1.442695
        %v580 = vpow.pop %v579
        %v581 = vmul.f32 %v576, 1.442695
        %v582 = vpow.pop %v581
        %v583 = vadd.f32 %v578, 1.0
        %v584 = vadd.f32 %v580, 1.0
        %v585 = vadd.f32 %v582, 1.0
        %v586 = vrcp.pop %v583
        %v587 = vmul.f32 1.0, %v586
        %v588 = vrcp.pop %v584
        %v589 = vmul.f32 1.0, %v588
        %v590 = vrcp.pop %v585
        %v591 = vmul.f32 1.0, %v590
        %v592 = vmul.f32 %v558, %v587
        %v593 = vmul.f32 %v564, %v589
        %v594 = vmul.f32 %v570, %v591
        %v595 = vmul.f32 %v592, %v560
        %v596 = vmul.f32 %v593, %v566
        %v597 = vmul.f32 %v594, %v572
        %v598 = vlaneseq
        %v599 = vshrl.u32 %v598, 7
        %v600 = vadd.s32 %v599, 8
        %v601 = vadd.s32 %v599, 16
        %s602 = ssub.s32 %s268, 1
        %v603 = vstv %s602
        %v604 = vadd.s32 %v599, %v603
        %v605 = vadd.s32 %v600, %v603
        %v606 = vadd.s32 %v601, %v603
        %vm607 = vcmp.ge.s32.totalorder %v604, 0
        %vm608 = vcmp.ge.s32.totalorder %v605, 0
        %vm609 = vcmp.ge.s32.totalorder %v606, 0
        %vm610 = vcmp.lt.s32.totalorder %v604, 16
        %vm611 = vcmp.lt.s32.totalorder %v605, 16
        %vm612 = vcmp.lt.s32.totalorder %v606, 16
        %vm613 = vmand %vm607, %vm610
        %vm614 = vmand %vm608, %vm611
        %vm615 = vmand %vm609, %vm612
        %v616 = vsel %vm613, 1, 0
        %v617 = vsel %vm614, 1, 0
        %v618 = vsel %vm615, 1, 0
        %vm619 = vcmp.eq.s32.totalorder %v616, 1
        %vm620 = vcmp.eq.s32.totalorder %v617, 1
        %vm621 = vcmp.eq.s32.totalorder %v618, 1
        %v622 = vsel %vm619, %v595, 0.0
        %v623 = vsel %vm620, %v596, 0.0
        %v624 = vsel %vm621, %v597, 0.0
        %v625 = vld [vmem:[#allocation5] sm:$0xff]
        %v626 = vld [vmem:[#allocation5 + $0x8] sm:$0xff]
        %v627 = vld [vmem:[#allocation5 + $0x10] sm:$0xff]
        %v628 = vld [vmem:[#allocation5 + $0x18] sm:$0xff]
        %v629 = vld [vmem:[#allocation5 + $0x20] sm:$0xff]
        %v630 = vld [vmem:[#allocation5 + $0x28] sm:$0xff]
        %v631 = vld [vmem:[#allocation5 + $0x30] sm:$0xff]
        %v632 = vld [vmem:[#allocation5 + $0x38] sm:$0xff]
        %v633 = vld [vmem:[#allocation5 + $0x40] sm:$0xff]
        %v634 = vld [vmem:[#allocation5 + $0x48] sm:$0xff]
        %v635 = vld [vmem:[#allocation5 + $0x50] sm:$0xff]
        %v636 = vld [vmem:[#allocation5 + $0x58] sm:$0xff]
        %v637 = vld [vmem:[#allocation5 + $0x60] sm:$0xff]
        %v638 = vld [vmem:[#allocation5 + $0x68] sm:$0xff]
        %v639 = vld [vmem:[#allocation5 + $0x70] sm:$0xff]
        %v640 = vld [vmem:[#allocation5 + $0x78] sm:$0xff]
        %s641 = scalar_lea.vmem [#allocation5], 128
        %v642 = vld [vmem:[%s641] sm:$0xff]
        %v643 = vld [vmem:[%s641 + $0x8] sm:$0xff]
        %v644 = vld [vmem:[%s641 + $0x10] sm:$0xff]
        %v645 = vld [vmem:[%s641 + $0x18] sm:$0xff]
        %v646 = vld [vmem:[%s641 + $0x20] sm:$0xff]
        %v647 = vld [vmem:[%s641 + $0x28] sm:$0xff]
        %v648 = vld [vmem:[%s641 + $0x30] sm:$0xff]
        %v649 = vld [vmem:[%s641 + $0x38] sm:$0xff]
        %v650 = vld [vmem:[%s641 + $0x40] sm:$0xff]
        %v651 = vld [vmem:[%s641 + $0x48] sm:$0xff]
        %v652 = vld [vmem:[%s641 + $0x50] sm:$0xff]
        %v653 = vld [vmem:[%s641 + $0x58] sm:$0xff]
        %v654 = vld [vmem:[%s641 + $0x60] sm:$0xff]
        %v655 = vld [vmem:[%s641 + $0x68] sm:$0xff]
        %v656 = vld [vmem:[%s641 + $0x70] sm:$0xff]
        %v657 = vld [vmem:[%s641 + $0x78] sm:$0xff]
        %v661 = vrot.slane %v622, 1
        %v662 = vrot.slane %v623, 1
        %v663 = vsel %vm278, %v661, %v662
        %v664 = vrot.slane %v624, 1
        %v665 = vsel %vm278, %v662, %v664
        %668 = vmatprep.subr.mxu0 0.0
        %669 = vmatpush1.msra.mxu0 %v642
        %670 = vmatprep.subr.mxu0 0.0
        %671 = vmatpush1.msra.mxu0 %v643
        %672 = vmatprep.subr.mxu0 0.0
        %673 = vmatpush1.msra.mxu0 %v644
        %674 = vmatprep.subr.mxu0 0.0
        %675 = vmatpush1.msra.mxu0 %v645
        %676 = vmatprep.subr.mxu0 0.0
        %677 = vmatpush1.msra.mxu0 %v646
        %678 = vmatprep.subr.mxu0 0.0
        %679 = vmatpush1.msra.mxu0 %v647
        %680 = vmatprep.subr.mxu0 0.0
        %681 = vmatpush1.msra.mxu0 %v648
        %682 = vmatprep.subr.mxu0 0.0
        %683 = vmatpush1.msra.mxu0 %v649
        %684 = vmatprep.subr.mxu0 0.0
        %685 = vmatpush1.msra.mxu0 %v650
        %686 = vmatprep.subr.mxu0 0.0
        %687 = vmatpush1.msra.mxu0 %v651
        %688 = vmatprep.subr.mxu0 0.0
        %689 = vmatpush1.msra.mxu0 %v652
        %690 = vmatprep.subr.mxu0 0.0
        %691 = vmatpush1.msra.mxu0 %v653
        %692 = vmatprep.subr.mxu0 0.0
        %693 = vmatpush1.msra.mxu0 %v654
        %694 = vmatprep.subr.mxu0 0.0
        %695 = vmatpush1.msra.mxu0 %v655
        %696 = vmatprep.subr.mxu0 0.0
        %697 = vmatpush1.msra.mxu0 %v656
        %698 = vmatprep.subr.mxu0 0.0
        %699 = vmatpush1.msra.mxu0 %v657
        %700 = vmatprep.subr.mxu0 0.0
        %701 = vmatpush1.msra.mxu0 0.0
        %702 = vmatprep.subr.mxu0 0.0
        %703 = vmatpush1.msra.mxu0 0.0
        %704 = vmatprep.subr.mxu0 0.0
        %705 = vmatpush1.msra.mxu0 0.0
        %706 = vmatprep.subr.mxu0 0.0
        %707 = vmatpush1.msra.mxu0 0.0
        %708 = vmatprep.subr.mxu0 0.0
        %709 = vmatpush1.msra.mxu0 0.0
        %710 = vmatprep.subr.mxu0 0.0
        %711 = vmatpush1.msra.mxu0 0.0
        %712 = vmatprep.subr.mxu0 0.0
        %713 = vmatpush1.msra.mxu0 0.0
        %714 = vmatprep.subr.mxu0 0.0
        %715 = vmatpush1.msra.mxu0 0.0
        %716 = vmatprep.subr.mxu0 0.0
        %717 = vmatpush1.msra.mxu0 0.0
        %718 = vmatprep.subr.mxu0 0.0
        %719 = vmatpush1.msra.mxu0 0.0
        %720 = vmatprep.subr.mxu0 0.0
        %721 = vmatpush1.msra.mxu0 0.0
        %722 = vmatprep.subr.mxu0 0.0
        %723 = vmatpush1.msra.mxu0 0.0
        %724 = vmatprep.subr.mxu0 0.0
        %725 = vmatpush1.msra.mxu0 0.0
        %726 = vmatprep.subr.mxu0 0.0
        %727 = vmatpush1.msra.mxu0 0.0
        %728 = vmatprep.subr.mxu0 0.0
        %729 = vmatpush1.msra.mxu0 0.0
        %730 = vmatprep.subr.mxu0 0.0
        %731 = vmatpush1.msra.mxu0 0.0
        %732 = vmatprep.mubr.f32.mxu0 0.0
        %733 = vmatmul.mubr.f32.gmra.mrb[0].mxu0 %v663
        %v734 = vpop.f32.mrb[0].mxu0
        %v735 = vadd.f32 0.0, %v734
        %v736 = vpop.f32.mrb[0].mxu0
        %737 = vmatprep.mubr.f32.mxu0 0.0
        %738 = vmatmul.mubr.f32.gmra.mrb[0].mxu0 %v665
        %v739 = vpop.f32.mrb[0].mxu0
        %v740 = vadd.f32 0.0, %v739
        %v741 = vpop.f32.mrb[0].mxu0
        %742 = vdwg.mxu0
        %743 = vmatprep.subr.mxu0 0.0
        %744 = vmatpush1.msra.mxu0 %v625
        %745 = vmatprep.subr.mxu0 0.0
        %746 = vmatpush1.msra.mxu0 %v626
        %747 = vmatprep.subr.mxu0 0.0
        %748 = vmatpush1.msra.mxu0 %v627
        %749 = vmatprep.subr.mxu0 0.0
        %750 = vmatpush1.msra.mxu0 %v628
        %751 = vmatprep.subr.mxu0 0.0
        %752 = vmatpush1.msra.mxu0 %v629
        %753 = vmatprep.subr.mxu0 0.0
        %754 = vmatpush1.msra.mxu0 %v630
        %755 = vmatprep.subr.mxu0 0.0
        %756 = vmatpush1.msra.mxu0 %v631
        %757 = vmatprep.subr.mxu0 0.0
        %758 = vmatpush1.msra.mxu0 %v632
        %759 = vmatprep.subr.mxu0 0.0
        %760 = vmatpush1.msra.mxu0 %v633
        %761 = vmatprep.subr.mxu0 0.0
        %762 = vmatpush1.msra.mxu0 %v634
        %763 = vmatprep.subr.mxu0 0.0
        %764 = vmatpush1.msra.mxu0 %v635
        %765 = vmatprep.subr.mxu0 0.0
        %766 = vmatpush1.msra.mxu0 %v636
        %767 = vmatprep.subr.mxu0 0.0
        %768 = vmatpush1.msra.mxu0 %v637
        %769 = vmatprep.subr.mxu0 0.0
        %770 = vmatpush1.msra.mxu0 %v638
        %771 = vmatprep.subr.mxu0 0.0
        %772 = vmatpush1.msra.mxu0 %v639
        %773 = vmatprep.subr.mxu0 0.0
        %774 = vmatpush1.msra.mxu0 %v640
        %775 = vmatprep.subr.mxu0 0.0
        %776 = vmatpush1.msra.mxu0 0.0
        %777 = vmatprep.subr.mxu0 0.0
        %778 = vmatpush1.msra.mxu0 0.0
        %779 = vmatprep.subr.mxu0 0.0
        %780 = vmatpush1.msra.mxu0 0.0
        %781 = vmatprep.subr.mxu0 0.0
        %782 = vmatpush1.msra.mxu0 0.0
        %783 = vmatprep.subr.mxu0 0.0
        %784 = vmatpush1.msra.mxu0 0.0
        %785 = vmatprep.subr.mxu0 0.0
        %786 = vmatpush1.msra.mxu0 0.0
        %787 = vmatprep.subr.mxu0 0.0
        %788 = vmatpush1.msra.mxu0 0.0
        %789 = vmatprep.subr.mxu0 0.0
        %790 = vmatpush1.msra.mxu0 0.0
        %791 = vmatprep.subr.mxu0 0.0
        %792 = vmatpush1.msra.mxu0 0.0
        %793 = vmatprep.subr.mxu0 0.0
        %794 = vmatpush1.msra.mxu0 0.0
        %795 = vmatprep.subr.mxu0 0.0
        %796 = vmatpush1.msra.mxu0 0.0
        %797 = vmatprep.subr.mxu0 0.0
        %798 = vmatpush1.msra.mxu0 0.0
        %799 = vmatprep.subr.mxu0 0.0
        %800 = vmatpush1.msra.mxu0 0.0
        %801 = vmatprep.subr.mxu0 0.0
        %802 = vmatpush1.msra.mxu0 0.0
        %803 = vmatprep.subr.mxu0 0.0
        %804 = vmatpush1.msra.mxu0 0.0
        %805 = vmatprep.subr.mxu0 0.0
        %806 = vmatpush1.msra.mxu0 0.0
        %807 = vmatprep.mubr.f32.mxu0 0.0
        %808 = vmatmul.mubr.f32.gmra.mrb[0].mxu0 %v622
        %v809 = vpop.f32.mrb[0].mxu0
        %v810 = vadd.f32 %v735, %v809
        %v811 = vpop.f32.mrb[0].mxu0
        %812 = vmatprep.mubr.f32.mxu0 0.0
        %813 = vmatmul.mubr.f32.gmra.mrb[0].mxu0 %v623
        %v814 = vpop.f32.mrb[0].mxu0
        %v815 = vadd.f32 %v740, %v814
        %v816 = vpop.f32.mrb[0].mxu0
        %817 = vdwg.mxu0
        %s818 = scalar_lea.vmem [#allocation5], 256
        %v819 = vld [vmem:[%s818] sm:$0xff]
        %v820 = vld [vmem:[%s818 + $0x8] sm:$0xff]
        %v821 = vld [vmem:[%s818 + $0x10] sm:$0xff]
        %v822 = vld [vmem:[%s818 + $0x18] sm:$0xff]
        %v823 = vld [vmem:[%s818 + $0x20] sm:$0xff]
        %v824 = vld [vmem:[%s818 + $0x28] sm:$0xff]
        %v825 = vld [vmem:[%s818 + $0x30] sm:$0xff]
        %v826 = vld [vmem:[%s818 + $0x38] sm:$0xff]
        %v827 = vld [vmem:[%s818 + $0x40] sm:$0xff]
        %v828 = vld [vmem:[%s818 + $0x48] sm:$0xff]
        %v829 = vld [vmem:[%s818 + $0x50] sm:$0xff]
        %v830 = vld [vmem:[%s818 + $0x58] sm:$0xff]
        %v831 = vld [vmem:[%s818 + $0x60] sm:$0xff]
        %v832 = vld [vmem:[%s818 + $0x68] sm:$0xff]
        %v833 = vld [vmem:[%s818 + $0x70] sm:$0xff]
        %v834 = vld [vmem:[%s818 + $0x78] sm:$0xff]
        %v835 = vrot.slane %v622, 2
        %v836 = vrot.slane %v623, 2
        %v837 = vsel %vm289, %v835, %v836
        %v838 = vrot.slane %v624, 2
        %v839 = vsel %vm289, %v836, %v838
        %842 = vmatprep.subr.mxu0 0.0
        %843 = vmatpush1.msra.mxu0 %v819
        %844 = vmatprep.subr.mxu0 0.0
        %845 = vmatpush1.msra.mxu0 %v820
        %846 = vmatprep.subr.mxu0 0.0
        %847 = vmatpush1.msra.mxu0 %v821
        %848 = vmatprep.subr.mxu0 0.0
        %849 = vmatpush1.msra.mxu0 %v822
        %850 = vmatprep.subr.mxu0 0.0
        %851 = vmatpush1.msra.mxu0 %v823
        %852 = vmatprep.subr.mxu0 0.0
        %853 = vmatpush1.msra.mxu0 %v824
        %854 = vmatprep.subr.mxu0 0.0
        %855 = vmatpush1.msra.mxu0 %v825
        %856 = vmatprep.subr.mxu0 0.0
        %857 = vmatpush1.msra.mxu0 %v826
        %858 = vmatprep.subr.mxu0 0.0
        %859 = vmatpush1.msra.mxu0 %v827
        %860 = vmatprep.subr.mxu0 0.0
        %861 = vmatpush1.msra.mxu0 %v828
        %862 = vmatprep.subr.mxu0 0.0
        %863 = vmatpush1.msra.mxu0 %v829
        %864 = vmatprep.subr.mxu0 0.0
        %865 = vmatpush1.msra.mxu0 %v830
        %866 = vmatprep.subr.mxu0 0.0
        %867 = vmatpush1.msra.mxu0 %v831
        %868 = vmatprep.subr.mxu0 0.0
        %869 = vmatpush1.msra.mxu0 %v832
        %870 = vmatprep.subr.mxu0 0.0
        %871 = vmatpush1.msra.mxu0 %v833
        %872 = vmatprep.subr.mxu0 0.0
        %873 = vmatpush1.msra.mxu0 %v834
        %874 = vmatprep.subr.mxu0 0.0
        %875 = vmatpush1.msra.mxu0 0.0
        %876 = vmatprep.subr.mxu0 0.0
        %877 = vmatpush1.msra.mxu0 0.0
        %878 = vmatprep.subr.mxu0 0.0
        %879 = vmatpush1.msra.mxu0 0.0
        %880 = vmatprep.subr.mxu0 0.0
        %881 = vmatpush1.msra.mxu0 0.0
        %882 = vmatprep.subr.mxu0 0.0
        %883 = vmatpush1.msra.mxu0 0.0
        %884 = vmatprep.subr.mxu0 0.0
        %885 = vmatpush1.msra.mxu0 0.0
        %886 = vmatprep.subr.mxu0 0.0
        %887 = vmatpush1.msra.mxu0 0.0
        %888 = vmatprep.subr.mxu0 0.0
        %889 = vmatpush1.msra.mxu0 0.0
        %890 = vmatprep.subr.mxu0 0.0
        %891 = vmatpush1.msra.mxu0 0.0
        %892 = vmatprep.subr.mxu0 0.0
        %893 = vmatpush1.msra.mxu0 0.0
        %894 = vmatprep.subr.mxu0 0.0
        %895 = vmatpush1.msra.mxu0 0.0
        %896 = vmatprep.subr.mxu0 0.0
        %897 = vmatpush1.msra.mxu0 0.0
        %898 = vmatprep.subr.mxu0 0.0
        %899 = vmatpush1.msra.mxu0 0.0
        %900 = vmatprep.subr.mxu0 0.0
        %901 = vmatpush1.msra.mxu0 0.0
        %902 = vmatprep.subr.mxu0 0.0
        %903 = vmatpush1.msra.mxu0 0.0
        %904 = vmatprep.subr.mxu0 0.0
        %905 = vmatpush1.msra.mxu0 0.0
        %906 = vmatprep.mubr.f32.mxu0 0.0
        %907 = vmatmul.mubr.f32.gmra.mrb[0].mxu0 %v837
        %v908 = vpop.f32.mrb[0].mxu0
        %v909 = vadd.f32 0.0, %v908
        %v910 = vpop.f32.mrb[0].mxu0
        %911 = vmatprep.mubr.f32.mxu0 0.0
        %912 = vmatmul.mubr.f32.gmra.mrb[0].mxu0 %v839
        %v913 = vpop.f32.mrb[0].mxu0
        %v914 = vadd.f32 0.0, %v913
        %v915 = vpop.f32.mrb[0].mxu0
        %916 = vdwg.mxu0
        %v917 = vadd.f32 %v810, %v909
        %v918 = vadd.f32 %v815, %v914
        %v919 = vld [vmem:[%s4] sm:$0x1]
        %v921 = vlaneseq
        %v922 = vshrl.u32 %v921, 7
        %v923 = vsub.s32 0, %v922
        %v924 = vrot.slane %v919, %v923
        %v926 = vadd.f32 %v917, %v924
        %v927 = vadd.f32 %v918, %v924
        %928 = vst [vmem:[%s261] sm:$0xff] %v926
        %929 = vst [vmem:[%s261 + $0x8] sm:$0xff] %v927
        %s930 = sand.u32 %s153, 1
        %s931 = scalar_lea.sflag [#allocation4], %s930
        %s932 = sand.u32 %s153, 1
        %s933 = smul.addr %s932, 16
        %s934 = scalar_lea.vmem [#allocation7], %s933
        // Predicated region
        $region49: #{tpu_custom_call.1} parent=39 // pred_check
          %p935 = pneg %p163
        $region50: #{tpu_custom_call.1} parent=39 // pred_check_branch
          %937 = sbr.rel (%p935) target = $region52
        $region51: #{tpu_custom_call.1} parent=39 // pred_region
          %s938 = smul.u32 2, %s26
          %s940 = ssub.s32 256, 256
          %941 = vsyncadd %s931, %s940
          %s942 = smul.addr %s25, 2
          %s943 = sadd.s32 %s938, %s942
          %s944 = smul.addr %s943, 128
          %s945 = scalar_lea.hbm %s5, %s944
          %s946 = sshll.u32 %s934, 4
          %s947 = int_to_ptr.vmem [resolvable:$true] %s946
          %952 = dma.vmem_to_hbm [thread:$0]  %s947, 256, %s945, %s931, 128, 128, 8
        $region52: #{tpu_custom_call.1} parent=39 // pred_fallthru
          _
      $region40: #{tpu_custom_call.1} parent=5 // pred_fallthru
        _
      %p953 = scmp.le.s32.totalorder 2, %s16
      // Predicated region
      $region53: #{tpu_custom_call.1} parent=5 // pred_check
        %p954 = pneg %p953
      $region54: #{tpu_custom_call.1} parent=5 // pred_check_branch
        %956 = sbr.rel (%p954) target = $region56
      $region55: #{tpu_custom_call.1} parent=5 // pred_region
        %s957 = ssub.s32 %s16, 2
        // Predicated region
        $region57: #{tpu_custom_call.1} parent=55 // pred_check
          %p958 = pneg %p169
        $region58: #{tpu_custom_call.1} parent=55 // pred_check_branch
          %960 = sbr.rel (%p958) target = $region60
        $region59: #{tpu_custom_call.1} parent=55 // pred_region
          %s961 = sand.u32 %s154, 1
          %s962 = scalar_lea.sflag [#allocation4], %s961
          %s963 = sand.u32 %s154, 1
          %s964 = smul.addr %s963, 16
          %s965 = scalar_lea.vmem [#allocation7], %s964
          %966 = dma.done %s962, 256
        $region60: #{tpu_custom_call.1} parent=55 // pred_fallthru
          _
      $region56: #{tpu_custom_call.1} parent=5 // pred_fallthru
        _
    $region6: #{tpu_custom_call.1} parent=1 // loop_footer
      %s20 = sadd.s32 1, %s16
    $region7: #{tpu_custom_call.1} parent=1 // loop_footer_branch
      %15 = sbr.rel target = $region3
    $region8: #{tpu_custom_call.1} parent=1 // loop_exit
      _
    %967 = vsyncpa [#allocation3], 1
    %s968 = scalar_lea.sflag [#allocation3], 1
    %969 = vsyncpa %s968, 1
    %970 = vsyncpa [#allocation6], 1
    %971 = vsyncpa [#allocation4], 1
    %s972 = scalar_lea.sflag [#allocation4], 1
    %973 = vsyncpa %s972, 1

</llo_original>
